<compile_context>
chip_gen: v7x
topology: tpu7x:2x2x1
jax: 0.10.0
libtpu: 0.0.40
codegen_flags: <defaults>
</compile_context>

<pallas_src>
import functools
import math

import numpy as np
import jax
import jax.numpy as jnp
from jax.experimental import pallas as pl
from jax.experimental.pallas import tpu as pltpu


# ---------------------------------------------------------------------------
# helpers
# ---------------------------------------------------------------------------
_MIB = 1 << 20

# fc-kernel tile caps (bigger tiles -> fewer grid steps, less operand
# re-streaming); the VMEM-budget fit below keeps the footprint v7x-safe.
_TB_CAP = 512      # batch tile
_TK_CAP = 1024     # reduction (dim_in) tile
_TN_CAP = 1024     # output (dim_out) tile
_FC_VMEM_BUDGET = 24 * _MIB    # double-buffered working-set target, kernel 2
_EMB_VMEM_BUDGET = 28 * _MIB   # working-set target, kernel 1


def _round_up(n, m):
    return ((n + m - 1) // m) * m


def _pad_and_tile(n, base, cap):
    """Pad n to a tileable size; returns (padded_n, tile)."""
    n_p = _round_up(max(n, 1), base)
    if n_p <= cap:
        return n_p, n_p
    return _round_up(n_p, cap), cap


def _pad2d(a, rows, cols, dtype):
    r, c = a.shape
    return jnp.pad(a, ((0, rows - r), (0, cols - c))).astype(dtype)


def _tile_bytes(rows, cols, itemsize, nbuf=1):
    """VMEM bytes of one (rows, cols) tile, padded to the (8, 128) vreg grid."""
    return nbuf * _round_up(rows, 8) * _round_up(cols, 128) * itemsize


def _vmem_limit(est_bytes):
    """Per-kernel vmem_limit_bytes: estimate + headroom, portable to v7x (64 MiB)."""
    return int(min(max(2 * est_bytes, est_bytes + 8 * _MIB), 56 * _MIB))


def _try_halve(tile, padded, base):
    """Halve a tile if the result still obeys the (8,128) rule and divides padded."""
    cand = tile // 2
    if cand >= base and cand % base == 0 and padded % cand == 0:
        return cand
    return tile


@functools.lru_cache(maxsize=None)
def _freq_table_np(half, half_p):
    """Sinusoidal frequency table exp(-log(10000)*arange(half)/half), zero-padded.

    Cached as numpy (device-agnostic); converted to a device array at call time.
    """
    exponent = -math.log(10000.0) * np.arange(half, dtype=np.float32) / half
    table = np.zeros((1, half_p), dtype=np.float32)
    table[0, :half] = np.exp(exponent)
    return table


# ---------------------------------------------------------------------------
# kernel 1: sinusoidal embedding + 2-layer time MLP, tiled over dim_out
# ---------------------------------------------------------------------------
def _time_emb_kernel(t_ref, freqs_ref, w1s_ref, w1c_ref, b1_ref, w2_ref, b2_ref,
                     emb_ref, h1_ref):
    cdt = w1s_ref.dtype                                    # MXU compute dtype (bf16)

    # First layer + SiLU depend only on the batch tile: compute them once per
    # batch tile (j == 0) into a persistent f32 VMEM scratch.
    @pl.when(pl.program_id(1) == 0)
    def _():
        arg = t_ref[...] * freqs_ref[...]                  # [tb, half_p], f32
        # split-weight form of concat([sin, cos]) @ w1
        h1 = (jnp.dot(jnp.sin(arg).astype(cdt), w1s_ref[...],
                      preferred_element_type=jnp.float32)
              + jnp.dot(jnp.cos(arg).astype(cdt), w1c_ref[...],
                        preferred_element_type=jnp.float32)
              + b1_ref[...])
        # SiLU in f32 via tanh (EUP slot, no VPU divide): sigmoid(x)=0.5*(tanh(x/2)+1)
        h1_ref[...] = h1 * (0.5 * (jnp.tanh(0.5 * h1) + 1.0))

    # Second layer, one dim_out slab of w2 per grid step (no full dout^2 residency).
    emb_ref[...] = (jnp.dot(h1_ref[...].astype(cdt), w2_ref[...],
                            preferred_element_type=jnp.float32)
                    + b2_ref[...]).astype(emb_ref.dtype)


# ---------------------------------------------------------------------------
# kernel 2: tiled fc matmul + elementwise modulation by emb
# ---------------------------------------------------------------------------
def _fc_mod_kernel(x_ref, wfc_ref, bfc_ref, emb_ref, o_ref, acc_ref):
    @pl.when(pl.program_id(2) == 0)
    def _():
        acc_ref[...] = jnp.zeros_like(acc_ref)

    acc_ref[...] += jnp.dot(x_ref[...], wfc_ref[...],
                            preferred_element_type=jnp.float32)

    @pl.when(pl.program_id(2) == pl.num_programs(2) - 1)
    def _():
        o_ref[...] = (emb_ref[...].astype(jnp.float32)
                      * (acc_ref[...] + bfc_ref[...])).astype(o_ref.dtype)


# ---------------------------------------------------------------------------
# wrapper
# ---------------------------------------------------------------------------
def linear_block_forward(x, t, params, frequency_embedding_size=256,
                         compute_dtype=jnp.bfloat16, emb_store_dtype=jnp.bfloat16):
    """x: [B, dim_in] f32, t: [B] timesteps. Returns [B, dim_out] f32."""
    B, dim_in = x.shape
    dim_out = params["wfc"].shape[1]
    half = frequency_embedding_size // 2

    B_p, tb = _pad_and_tile(B, 8, _TB_CAP)
    din_p, tk = _pad_and_tile(dim_in, 128, _TK_CAP)
    dout_p, tn = _pad_and_tile(dim_out, 128, _TN_CAP)
    half_p = _round_up(half, 128)

    cbytes = jnp.dtype(compute_dtype).itemsize
    ebytes = jnp.dtype(emb_store_dtype).itemsize

    # ---- fit fc-kernel tiles to the VMEM budget (keeps 64-MiB v7x safe) ----
    def fc_bytes(tb_, tk_, tn_):
        return (_tile_bytes(tb_, tk_, cbytes, 2)       # x (double buffered)
                + _tile_bytes(tk_, tn_, cbytes, 2)     # wfc
                + _tile_bytes(1, tn_, 4, 2)            # bfc
                + _tile_bytes(tb_, tn_, ebytes, 2)     # emb
                + _tile_bytes(tb_, tn_, 4, 2)          # out (f32)
                + _tile_bytes(tb_, tn_, 4, 1))         # accumulator scratch

    while fc_bytes(tb, tk, tn) > _FC_VMEM_BUDGET:
        tk2 = _try_halve(tk, din_p, 128)
        if tk2 != tk:
            tk = tk2
            continue
        tn2 = _try_halve(tn, dout_p, 128)
        if tn2 != tn:
            tn = tn2
            continue
        tb2 = _try_halve(tb, B_p, 8)
        if tb2 != tb:
            tb = tb2
            continue
        break

    # ---- v7x megacore: try to give the parallel (i, j) grid >= 2 blocks ----
    if (B_p // tb) * (dout_p // tn) < 2:
        tn2 = _try_halve(tn, dout_p, 128)
        if tn2 != tn:
            tn = tn2
        else:
            tb = _try_halve(tb, B_p, 8)

    # ---- kernel-1 tiles: batch tile <= 256, dim_out tile divides dout_p ----
    tb_e = tb
    while tb_e > 256:
        nxt = _try_halve(tb_e, B_p, 8)
        if nxt == tb_e:
            break
        tb_e = nxt
    # dout_p is either <= _TN_CAP (single slab) or a multiple of _TN_CAP, so
    # 512 always divides it in the large case.
    tn_e = dout_p if dout_p <= 1024 else 512

    def emb_bytes(tb_, tn_):
        return (_tile_bytes(tb_, 1, 4, 2)                      # t
                + _tile_bytes(1, half_p, 4, 1)                 # freqs (Buffered(1))
                + 2 * _tile_bytes(half_p, dout_p, cbytes, 1)   # w1 sin/cos (Buffered(1))
                + _tile_bytes(1, dout_p, 4, 1)                 # b1 (Buffered(1))
                + _tile_bytes(dout_p, tn_, cbytes, 2)          # w2 slab
                + _tile_bytes(1, tn_, 4, 2)                    # b2
                + _tile_bytes(tb_, tn_, ebytes, 2)             # emb out
                + _tile_bytes(tb_, dout_p, 4, 1))              # h1 scratch

    while emb_bytes(tb_e, tn_e) > _EMB_VMEM_BUDGET:
        tn2 = _try_halve(tn_e, dout_p, 128)
        if tn2 != tn_e:
            tn_e = tn2
            continue
        tb2 = _try_halve(tb_e, B_p, 8)
        if tb2 != tb_e:
            tb_e = tb2
            continue
        break
    # TODO(synk): for extreme dim_out (>~16k) the w2 slab's first (hidden) axis
    # would also need tiling (a K grid axis for the second matmul).

    # ---- pad / cast operands (zero padding keeps the math exact) ----
    xp = _pad2d(x.astype(jnp.float32), B_p, din_p, compute_dtype)
    wfc = _pad2d(params["wfc"], din_p, dout_p, compute_dtype)
    bfc = _pad2d(params["bfc"], 1, dout_p, jnp.float32)

    t = jnp.atleast_1d(t).astype(jnp.float32)
    t2d = jnp.pad(t, (0, B_p - B)).reshape(B_p, 1)
    freqs = jnp.asarray(_freq_table_np(half, half_p))

    # Split w1 into sin/cos halves (odd frequency_embedding_size: the PyTorch
    # zero-pad column multiplies the dropped last row, so this stays exact).
    w1 = params["w1"]
    w1s = _pad2d(w1[:half], half_p, dout_p, compute_dtype)
    w1c = _pad2d(w1[half:2 * half], half_p, dout_p, compute_dtype)
    b1 = _pad2d(params["b1"], 1, dout_p, jnp.float32)
    w2 = _pad2d(params["w2"], dout_p, dout_p, compute_dtype)
    b2 = _pad2d(params["b2"], 1, dout_p, jnp.float32)

    cparams_emb = pltpu.CompilerParams(
        dimension_semantics=("parallel", "arbitrary"),
        vmem_limit_bytes=_vmem_limit(emb_bytes(tb_e, tn_e)),
    )
    cparams_fc = pltpu.CompilerParams(
        dimension_semantics=("parallel", "parallel", "arbitrary"),
        vmem_limit_bytes=_vmem_limit(fc_bytes(tb, tk, tn)),
    )

    const1 = pl.Buffered(1)  # constant-index inputs: one VMEM buffer is enough

    # ---- kernel 1: emb = MLP(timestep_embedding(t)) -> [B_p, dout_p] bf16 ----
    emb = pl.pallas_call(
        _time_emb_kernel,
        out_shape=jax.ShapeDtypeStruct((B_p, dout_p), emb_store_dtype),
        grid=(B_p // tb_e, dout_p // tn_e),
        in_specs=[
            pl.BlockSpec((tb_e, 1), lambda i, j: (i, 0)),                        # t
            pl.BlockSpec((1, half_p), lambda i, j: (0, 0), pipeline_mode=const1),   # freqs
            pl.BlockSpec((half_p, dout_p), lambda i, j: (0, 0), pipeline_mode=const1),  # w1_sin
            pl.BlockSpec((half_p, dout_p), lambda i, j: (0, 0), pipeline_mode=const1),  # w1_cos
            pl.BlockSpec((1, dout_p), lambda i, j: (0, 0), pipeline_mode=const1),       # b1
            pl.BlockSpec((dout_p, tn_e), lambda i, j: (0, j)),                   # w2 slab
            pl.BlockSpec((1, tn_e), lambda i, j: (0, j)),                        # b2
        ],
        out_specs=pl.BlockSpec((tb_e, tn_e), lambda i, j: (i, j)),
        scratch_shapes=[pltpu.VMEM((tb_e, dout_p), jnp.float32)],                # h1
        compiler_params=cparams_emb,
    )(t2d, freqs, w1s, w1c, b1, w2, b2)

    # ---- kernel 2: out = emb * (x @ wfc + bfc), tiled over (B, N, K) ----
    out_p = pl.pallas_call(
        _fc_mod_kernel,
        out_shape=jax.ShapeDtypeStruct((B_p, dout_p), jnp.float32),
        grid=(B_p // tb, dout_p // tn, din_p // tk),
        in_specs=[
            pl.BlockSpec((tb, tk), lambda i, j, k: (i, k)),      # x
            pl.BlockSpec((tk, tn), lambda i, j, k: (k, j)),      # wfc
            pl.BlockSpec((1, tn), lambda i, j, k: (0, j)),       # bfc
            pl.BlockSpec((tb, tn), lambda i, j, k: (i, j)),      # emb
        ],
        out_specs=pl.BlockSpec((tb, tn), lambda i, j, k: (i, j)),
        scratch_shapes=[pltpu.VMEM((tb, tn), jnp.float32)],
        compiler_params=cparams_fc,
    )(xp, wfc, bfc, emb)

    return out_p[:B, :dim_out]


# ---------------------------------------------------------------------------
# parameter init + plain-JAX reference (mirrors the PyTorch module)
# ---------------------------------------------------------------------------
def init_params(key, dim_in, dim_out, frequency_embedding_size=256):
    ks = jax.random.split(key, 6)

    def lin(kw, kb, fan_in, fan_out):
        bound = 1.0 / math.sqrt(fan_in)
        w = jax.random.uniform(kw, (fan_in, fan_out), jnp.float32, -bound, bound)
        b = jax.random.uniform(kb, (1, fan_out), jnp.float32, -bound, bound)
        return w, b

    wfc, bfc = lin(ks[0], ks[1], dim_in, dim_out)
    w1, b1 = lin(ks[2], ks[3], frequency_embedding_size, dim_out)
    w2, b2 = lin(ks[4], ks[5], dim_out, dim_out)
    return {"wfc": wfc, "bfc": bfc, "w1": w1, "b1": b1, "w2": w2, "b2": b2}


def _reference_forward(x, t, params, frequency_embedding_size=256,
                       compute_dtype=jnp.float32, emb_store_dtype=None):
    """Mirrors the PyTorch LinearBlock ([sin, cos] concat order).

    compute_dtype quantizes matmul inputs the same way the kernel does (f32
    accumulation); emb_store_dtype mirrors the kernel's intermediate emb dtype.
    """
    def q(a):
        return a.astype(compute_dtype).astype(jnp.float32)

    half = frequency_embedding_size // 2
    exponent = -math.log(10000.0) * jnp.arange(half, dtype=jnp.float32) / half
    arg = t.astype(jnp.float32)[:, None] * jnp.exp(exponent)[None, :]
    t_freq = jnp.concatenate([jnp.sin(arg), jnp.cos(arg)], axis=-1)
    h1 = q(t_freq) @ q(params["w1"]) + params["b1"]
    h1 = h1 * jax.nn.sigmoid(h1)
    emb = q(h1) @ q(params["w2"]) + params["b2"]
    if emb_store_dtype is not None:
        emb = emb.astype(emb_store_dtype).astype(jnp.float32)
    hx = q(x) @ q(params["wfc"]) + params["bfc"]
    return emb * hx


# ---------------------------------------------------------------------------
if __name__ == "__main__":
    key = jax.random.PRNGKey(0)
    k_p, k_x, k_t = jax.random.split(key, 3)

    B, dim_in, dim_out = 4, 32, 32
    num_timesteps = 1000  # only scales the synthetic timesteps

    params = init_params(k_p, dim_in, dim_out)
    x = jax.random.normal(k_x, (B, dim_in), dtype=jnp.float32)
    t = jax.random.randint(k_t, (B,), 0, num_timesteps).astype(jnp.float32)

    out = jax.block_until_ready(linear_block_forward(x, t, params))
    assert out.shape == (B, dim_out)

    # tight check vs a reference with the same bf16 MXU-input / emb quantization
    ref_q = _reference_forward(x, t, params, compute_dtype=jnp.bfloat16,
                               emb_store_dtype=jnp.bfloat16)
    assert jnp.allclose(out, ref_q, atol=2e-3, rtol=2e-3), "mismatch vs bf16-mirrored reference"
    # looser sanity check vs the pure-f32 PyTorch-equivalent reference
    ref_f32 = _reference_forward(x, t, params)
    assert jnp.allclose(out, ref_f32, atol=1e-1, rtol=1e-1), "mismatch vs f32 reference"

    print("KERNEL_OK")
</pallas_src>

<mosaic_0001>
module attributes {stable_mosaic.version = 11 : i64} {
  func.func @_time_emb_kernel(%arg0: i32, %arg1: i32, %arg2: memref<8x1xf32, #tpu.memory_space<vmem>>, %arg3: memref<1x128xf32, #tpu.memory_space<vmem>>, %arg4: memref<128x128xbf16, #tpu.memory_space<vmem>>, %arg5: memref<128x128xbf16, #tpu.memory_space<vmem>>, %arg6: memref<1x128xf32, #tpu.memory_space<vmem>>, %arg7: memref<128x128xbf16, #tpu.memory_space<vmem>>, %arg8: memref<1x128xf32, #tpu.memory_space<vmem>>, %arg9: memref<8x128xbf16, #tpu.memory_space<vmem>>, %arg10: memref<8x128xf32, #tpu.memory_space<vmem>>) attributes {dimension_semantics = [#tpu.dimension_semantics<parallel>, #tpu.dimension_semantics<arbitrary>], iteration_bounds = array<i64: 1, 1>, scalar_prefetch = 0 : i64, scratch_operands = 1 : i64, tpu.core_type = #tpu.core_type<tc>, window_params = [{transform_indices = @transform_0, window_bounds = array<i64: 8, 1>}, {pipeline_mode = #tpu.pipeline_mode<synchronous>, transform_indices = @transform_1, window_bounds = array<i64: 1, 128>}, {pipeline_mode = #tpu.pipeline_mode<synchronous>, transform_indices = @transform_2, window_bounds = array<i64: 128, 128>}, {pipeline_mode = #tpu.pipeline_mode<synchronous>, transform_indices = @transform_3, window_bounds = array<i64: 128, 128>}, {pipeline_mode = #tpu.pipeline_mode<synchronous>, transform_indices = @transform_4, window_bounds = array<i64: 1, 128>}, {transform_indices = @transform_5, window_bounds = array<i64: 128, 128>}, {transform_indices = @transform_6, window_bounds = array<i64: 1, 128>}, {transform_indices = @transform_7, window_bounds = array<i64: 8, 128>}]} {
    %c0_i32 = arith.constant 0 : i32
    %0 = arith.cmpi eq, %arg1, %c0_i32 : i32
    %1 = arith.extui %0 : i1 to i32
    %c0_i32_0 = arith.constant 0 : i32
    %2 = arith.cmpi ne, %1, %c0_i32_0 : i32
    scf.if %2 {
      %c0_8 = arith.constant 0 : index
      %c0_9 = arith.constant 0 : index
      %12 = vector.load %arg2[%c0_8, %c0_9] : memref<8x1xf32, #tpu.memory_space<vmem>>, vector<8x1xf32>
      %c0_10 = arith.constant 0 : index
      %c0_11 = arith.constant 0 : index
      %13 = vector.load %arg3[%c0_10, %c0_11] : memref<1x128xf32, #tpu.memory_space<vmem>>, vector<1x128xf32>
      %14 = vector.broadcast %12 : vector<8x1xf32> to vector<8x128xf32>
      %15 = vector.broadcast %13 : vector<1x128xf32> to vector<8x128xf32>
      %16 = arith.mulf %14, %15 : vector<8x128xf32>
      %17 = math.sin %16 : vector<8x128xf32>
      %18 = arith.truncf %17 : vector<8x128xf32> to vector<8x128xbf16>
      %c0_12 = arith.constant 0 : index
      %c0_13 = arith.constant 0 : index
      %19 = vector.load %arg4[%c0_12, %c0_13] : memref<128x128xbf16, #tpu.memory_space<vmem>>, vector<128x128xbf16>
      %cst_14 = arith.constant dense<0.000000e+00> : vector<8x128xf32>
      %20 = tpu.matmul %18, %19, %cst_14 {dimension_numbers = #tpu.dot_dimension_numbers<[1], [0], [0], [1], [0, 0, 1, 1], [], []>} : vector<8x128xbf16>, vector<128x128xbf16>, vector<8x128xf32> -> vector<8x128xf32>
      %21 = math.cos %16 : vector<8x128xf32>
      %22 = arith.truncf %21 : vector<8x128xf32> to vector<8x128xbf16>
      %c0_15 = arith.constant 0 : index
      %c0_16 = arith.constant 0 : index
      %23 = vector.load %arg5[%c0_15, %c0_16] : memref<128x128xbf16, #tpu.memory_space<vmem>>, vector<128x128xbf16>
      %cst_17 = arith.constant dense<0.000000e+00> : vector<8x128xf32>
      %24 = tpu.matmul %22, %23, %cst_17 {dimension_numbers = #tpu.dot_dimension_numbers<[1], [0], [0], [1], [0, 0, 1, 1], [], []>} : vector<8x128xbf16>, vector<128x128xbf16>, vector<8x128xf32> -> vector<8x128xf32>
      %25 = arith.addf %20, %24 : vector<8x128xf32>
      %c0_18 = arith.constant 0 : index
      %c0_19 = arith.constant 0 : index
      %26 = vector.load %arg6[%c0_18, %c0_19] : memref<1x128xf32, #tpu.memory_space<vmem>>, vector<1x128xf32>
      %27 = vector.broadcast %26 : vector<1x128xf32> to vector<8x128xf32>
      %28 = arith.addf %25, %27 : vector<8x128xf32>
      %cst_20 = arith.constant 5.000000e-01 : f32
      %29 = vector.broadcast %cst_20 : f32 to vector<8x128xf32>
      %30 = arith.mulf %29, %28 : vector<8x128xf32>
      %31 = math.tanh %30 : vector<8x128xf32>
      %cst_21 = arith.constant 1.000000e+00 : f32
      %32 = vector.broadcast %cst_21 : f32 to vector<8x128xf32>
      %33 = arith.addf %31, %32 : vector<8x128xf32>
      %cst_22 = arith.constant 5.000000e-01 : f32
      %34 = vector.broadcast %cst_22 : f32 to vector<8x128xf32>
      %35 = arith.mulf %34, %33 : vector<8x128xf32>
      %36 = arith.mulf %28, %35 : vector<8x128xf32>
      %c0_23 = arith.constant 0 : index
      %c0_24 = arith.constant 0 : index
      %37 = vector.load %arg10[%c0_23, %c0_24] : memref<8x128xf32, #tpu.memory_space<vmem>>, vector<8x128xf32>
      tpu.vector_store %arg10[%c0_23, %c0_24], %36 {strides = array<i32>} : memref<8x128xf32, #tpu.memory_space<vmem>>, vector<8x128xf32>,
    } else {
    }
    %c0 = arith.constant 0 : index
    %c0_1 = arith.constant 0 : index
    %3 = vector.load %arg10[%c0, %c0_1] : memref<8x128xf32, #tpu.memory_space<vmem>>, vector<8x128xf32>
    %4 = arith.truncf %3 : vector<8x128xf32> to vector<8x128xbf16>
    %c0_2 = arith.constant 0 : index
    %c0_3 = arith.constant 0 : index
    %5 = vector.load %arg7[%c0_2, %c0_3] : memref<128x128xbf16, #tpu.memory_space<vmem>>, vector<128x128xbf16>
    %cst = arith.constant dense<0.000000e+00> : vector<8x128xf32>
    %6 = tpu.matmul %4, %5, %cst {dimension_numbers = #tpu.dot_dimension_numbers<[1], [0], [0], [1], [0, 0, 1, 1], [], []>} : vector<8x128xbf16>, vector<128x128xbf16>, vector<8x128xf32> -> vector<8x128xf32>
    %c0_4 = arith.constant 0 : index
    %c0_5 = arith.constant 0 : index
    %7 = vector.load %arg8[%c0_4, %c0_5] : memref<1x128xf32, #tpu.memory_space<vmem>>, vector<1x128xf32>
    %8 = vector.broadcast %7 : vector<1x128xf32> to vector<8x128xf32>
    %9 = arith.addf %6, %8 : vector<8x128xf32>
    %10 = arith.truncf %9 : vector<8x128xf32> to vector<8x128xbf16>
    %c0_6 = arith.constant 0 : index
    %c0_7 = arith.constant 0 : index
    %11 = vector.load %arg9[%c0_6, %c0_7] : memref<8x128xbf16, #tpu.memory_space<vmem>>, vector<8x128xbf16>
    tpu.vector_store %arg9[%c0_6, %c0_7], %10 {strides = array<i32>} : memref<8x128xbf16, #tpu.memory_space<vmem>>, vector<8x128xbf16>,
    return
  }
  func.func @transform_0(%arg0: i32, %arg1: i32) -> (i32, i32) {
    %c0_i32 = arith.constant 0 : i32
    %c0_i32_0 = arith.constant 0 : i32
    return %arg0, %c0_i32 : i32, i32
  }
  func.func @transform_1(%arg0: i32, %arg1: i32) -> (i32, i32) {
    %c0_i32 = arith.constant 0 : i32
    %c0_i32_0 = arith.constant 0 : i32
    %c0_i32_1 = arith.constant 0 : i32
    return %c0_i32, %c0_i32_0 : i32, i32
  }
  func.func @transform_2(%arg0: i32, %arg1: i32) -> (i32, i32) {
    %c0_i32 = arith.constant 0 : i32
    %c0_i32_0 = arith.constant 0 : i32
    %c0_i32_1 = arith.constant 0 : i32
    return %c0_i32, %c0_i32_0 : i32, i32
  }
  func.func @transform_3(%arg0: i32, %arg1: i32) -> (i32, i32) {
    %c0_i32 = arith.constant 0 : i32
    %c0_i32_0 = arith.constant 0 : i32
    %c0_i32_1 = arith.constant 0 : i32
    return %c0_i32, %c0_i32_0 : i32, i32
  }
  func.func @transform_4(%arg0: i32, %arg1: i32) -> (i32, i32) {
    %c0_i32 = arith.constant 0 : i32
    %c0_i32_0 = arith.constant 0 : i32
    %c0_i32_1 = arith.constant 0 : i32
    return %c0_i32, %c0_i32_0 : i32, i32
  }
  func.func @transform_5(%arg0: i32, %arg1: i32) -> (i32, i32) {
    %c0_i32 = arith.constant 0 : i32
    %c0_i32_0 = arith.constant 0 : i32
    return %c0_i32, %arg1 : i32, i32
  }
  func.func @transform_6(%arg0: i32, %arg1: i32) -> (i32, i32) {
    %c0_i32 = arith.constant 0 : i32
    %c0_i32_0 = arith.constant 0 : i32
    return %c0_i32, %arg1 : i32, i32
  }
  func.func @transform_7(%arg0: i32, %arg1: i32) -> (i32, i32) {
    %c0_i32 = arith.constant 0 : i32
    return %arg0, %arg1 : i32, i32
  }
}

</mosaic_0001>

<llo_original>
// kernel: tpu_custom_call.1
$region0: #{tpu_custom_call.1}
  #allocation0 [shape = 'u32[]', space=smem, size = 0x4, offset = 0x4, fixed_abs, tag = 'smem constant byte address 0x4 - core index']
  #allocation1 [shape = 'u32[144,128]{1,0:T(1,128)}', space=vmem, size = 0x12000, scoped, tag = 'internal scratch']
  #allocation2 [shape = 'f32[8,128]{1,0:T(8,128)}', space=vmem, size = 0x1000, scoped, tag = 'scratch operand']
  %s0 = inlined_call_operand.vmem [shape: f32[8,1], index: 0, kind: input, shape index: {}]
  %s1 = inlined_call_operand.vmem [shape: f32[1,128], index: 1, kind: input, shape index: {}]
  %s2 = inlined_call_operand.hbm [shape: bf16[128,128], index: 2, kind: input, shape index: {}]
  %s3 = inlined_call_operand.hbm [shape: bf16[128,128], index: 3, kind: input, shape index: {}]
  %s4 = inlined_call_operand.vmem [shape: f32[1,128], index: 4, kind: input, shape index: {}]
  %s5 = inlined_call_operand.hbm [shape: bf16[128,128], index: 5, kind: input, shape index: {}]
  %s6 = inlined_call_operand.vmem [shape: f32[1,128], index: 6, kind: input, shape index: {}]
  %s7 = inlined_call_operand.hbm [shape: bf16[8,128], index: 7, kind: output, shape index: {}]
  %s8 = sld [smem:[#allocation0]]
  $region54: #{tpu_custom_call.1} parent=0
    _
  %s10 = ssub.s32 1, %s8
  %s11 = scalar_select 0, %s10, %s8
  $region1: #{tpu_custom_call.1} parent=0
    #allocation3 [shape = 'u8[32768]{0}', space=vmem, size = 0x8000, scoped, tag = 'input window, operand 2, single buffered']
    #allocation4 [shape = 's32[1]{0}', space=sflag, size = 0x4, scoped, tag = 'scoped memory for tpu_custom_call.1']
    #allocation5 [shape = 's32[1]{0}', space=sflag, size = 0x4, scoped, tag = 'scoped memory for tpu_custom_call.1']
    #allocation6 [shape = 'u8[32768]{0}', space=vmem, size = 0x8000, scoped, tag = 'input window, operand 3, single buffered']
    #allocation7 [shape = 's32[1]{0}', space=sflag, size = 0x4, scoped, tag = 'scoped memory for tpu_custom_call.1']
    #allocation8 [shape = 'u8[32768]{0}', space=vmem, size = 0x8000, scoped, tag = 'input window, operand 5, single buffered']
    #allocation9 [shape = 'u8[2048]{0}', space=vmem, size = 0x800, scoped, tag = 'output window, operand 0, single buffered']
    %12 = vsyncpa [#allocation4], 0
    %13 = vsyncpa [#allocation7], 0
    %14 = vsyncpa [#allocation5], 0
    // Predicated region
    $region2: #{tpu_custom_call.1} parent=1 // pred_check
      _
    $region3: #{tpu_custom_call.1} parent=1 // pred_check_branch
      %16 = sbr.rel (0) target = $region5
    $region4: #{tpu_custom_call.1} parent=1 // pred_region
      _
    $region5: #{tpu_custom_call.1} parent=1 // pred_fallthru
      _
    // Predicated region
    $region6: #{tpu_custom_call.1} parent=1 // pred_check
      _
    $region7: #{tpu_custom_call.1} parent=1 // pred_check_branch
      %18 = sbr.rel (0) target = $region9
    $region8: #{tpu_custom_call.1} parent=1 // pred_region
      _
    $region9: #{tpu_custom_call.1} parent=1 // pred_fallthru
      _
    // Predicated region
    $region10: #{tpu_custom_call.1} parent=1 // pred_check
      _
    $region11: #{tpu_custom_call.1} parent=1 // pred_check_branch
      %20 = sbr.rel (0) target = $region13
    $region12: #{tpu_custom_call.1} parent=1 // pred_region
      %s22 = ssub.s32 1024, 1024
      %23 = vsyncadd [#allocation4], %s22
      %s24 = sshll.u32 [#allocation3], 4
      %s25 = int_to_ptr.vmem [resolvable:$true] %s24
      %30 = dma.hbm_to_vmem [thread:$0]  %s2, 1024, %s25, [#allocation4], 64, 64, 4
    $region13: #{tpu_custom_call.1} parent=1 // pred_fallthru
      _
    // Predicated region
    $region14: #{tpu_custom_call.1} parent=1 // pred_check
      _
    $region15: #{tpu_custom_call.1} parent=1 // pred_check_branch
      %32 = sbr.rel (0) target = $region17
    $region16: #{tpu_custom_call.1} parent=1 // pred_region
      %s34 = ssub.s32 1024, 1024
      %35 = vsyncadd [#allocation7], %s34
      %s36 = sshll.u32 [#allocation6], 4
      %s37 = int_to_ptr.vmem [resolvable:$true] %s36
      %42 = dma.hbm_to_vmem [thread:$0]  %s3, 1024, %s37, [#allocation7], 64, 64, 4
    $region17: #{tpu_custom_call.1} parent=1 // pred_fallthru
      _
    // Predicated region
    $region18: #{tpu_custom_call.1} parent=1 // pred_check
      _
    $region19: #{tpu_custom_call.1} parent=1 // pred_check_branch
      %44 = sbr.rel (0) target = $region21
    $region20: #{tpu_custom_call.1} parent=1 // pred_region
      _
    $region21: #{tpu_custom_call.1} parent=1 // pred_fallthru
      _
    // Predicated region
    $region22: #{tpu_custom_call.1} parent=1 // pred_check
      _
    $region23: #{tpu_custom_call.1} parent=1 // pred_check_branch
      %46 = sbr.rel (0) target = $region25
    $region24: #{tpu_custom_call.1} parent=1 // pred_region
      %s48 = ssub.s32 1024, 1024
      %49 = vsyncadd [#allocation7], %s48
      %s50 = sshll.u32 [#allocation8], 4
      %s51 = int_to_ptr.vmem [resolvable:$true] %s50
      %56 = dma.hbm_to_vmem [thread:$0]  %s5, 1024, %s51, [#allocation7], 64, 64, 4
    $region25: #{tpu_custom_call.1} parent=1 // pred_fallthru
      _
    // Predicated region
    $region26: #{tpu_custom_call.1} parent=1 // pred_check
      _
    $region27: #{tpu_custom_call.1} parent=1 // pred_check_branch
      %58 = sbr.rel (0) target = $region29
    $region28: #{tpu_custom_call.1} parent=1 // pred_region
      _
    $region29: #{tpu_custom_call.1} parent=1 // pred_fallthru
      _
    // Predicated region
    $region30: #{tpu_custom_call.1} parent=1 // pred_check
      _
    $region31: #{tpu_custom_call.1} parent=1 // pred_check_branch
      %60 = sbr.rel (0) target = $region33
    $region32: #{tpu_custom_call.1} parent=1 // pred_region
      %61 = dma.done [#allocation4], 1024
    $region33: #{tpu_custom_call.1} parent=1 // pred_fallthru
      _
    // Predicated region
    $region34: #{tpu_custom_call.1} parent=1 // pred_check
      _
    $region35: #{tpu_custom_call.1} parent=1 // pred_check_branch
      %63 = sbr.rel (0) target = $region37
    $region36: #{tpu_custom_call.1} parent=1 // pred_region
      %64 = dma.done [#allocation7], 1024
    $region37: #{tpu_custom_call.1} parent=1 // pred_fallthru
      _
    // Predicated region
    $region38: #{tpu_custom_call.1} parent=1 // pred_check
      _
    $region39: #{tpu_custom_call.1} parent=1 // pred_check_branch
      %66 = sbr.rel (0) target = $region41
    $region40: #{tpu_custom_call.1} parent=1 // pred_region
      %67 = dma.done [#allocation7], 1024
    $region41: #{tpu_custom_call.1} parent=1 // pred_fallthru
      _
    %p69 = scmp.eq.s32.totalorder 0, 0
    // Predicated region
    $region42: #{tpu_custom_call.1} parent=1 // pred_check
      %p70 = pneg %p69
    $region43: #{tpu_custom_call.1} parent=1 // pred_check_branch
      %72 = sbr.rel (%p70) target = $region45
    $region44: #{tpu_custom_call.1} parent=1 // pred_region
      %v73 = vld [vmem:[%s0] sm:$0xff]
      %v74 = vld [vmem:[%s1] sm:$0x1]
      %76 = vset.pattern.permute.xlu0 0
      %77 = vperm.xlu0 %76, %v73
      %v78 = vpop.permute.xlu0 %77
      %v81 = vlaneseq
      %v82 = vshrl.u32 %v81, 7
      %v83 = vsub.s32 0, %v82
      %v84 = vrot.slane %v74, %v83
      %v86 = vmul.f32 %v78, %v84
      %v87 = vand.u32 2147483647, %v86
      %vm88 = vcmp.le.f32.partialorder %v87, 0.7853982
      %vm89 = vcmp.lt.s32.totalorder %v86, 0
      %v90 = vand.u32 %v86, 2139095040
      %v91 = vshrl.u32 %v90, 23
      %v92 = vsub.s32 %v91, 127
      %v93 = vand.u32 2147483647, %v86
      %v94 = vand.u32 %v93, 8388607
      %v95 = vor.u32 %v94, 8388608
      %v96 = vsub.s32 0, %v95
      %v97 = vadd.s32 %v92, 1
      %vm98 = vcmp.gt.s32.totalorder %v97, 0
      %v99 = vsel %vm98, %v97, 0
      %v100 = vshrl.u32 %v99, 5
      %v101 = vand.u32 %v99, 31
      %v102 = vsub.s32 32, %v101
      %v103 = vshrl.u32 683565275, %v102
      %v104 = vshll.u32 683565275, %v101
      %v105 = vshrl.u32 2475754826, %v102
      %v106 = vor.u32 %v104, %v105
      %v107 = vshll.u32 2475754826, %v101
      %v108 = vshrl.u32 2131351028, %v102
      %v109 = vor.u32 %v107, %v108
      %v110 = vshll.u32 2131351028, %v101
      %v111 = vshrl.u32 2102212464, %v102
      %v112 = vor.u32 %v110, %v111
      %v113 = vshll.u32 2102212464, %v101
      %v114 = vshrl.u32 920167782, %v102
      %v115 = vor.u32 %v113, %v114
      %v116 = vshll.u32 920167782, %v101
      %v117 = vshrl.u32 1326507024, %v102
      %v118 = vor.u32 %v116, %v117
      %vm119 = vcmp.lt.s32.totalorder %v100, 1
      %vm120 = vcmp.lt.s32.totalorder %v100, 2
      %vm121 = vcmp.lt.s32.totalorder %v100, 3
      %vm122 = vcmp.lt.s32.totalorder %v100, 4
      %v123 = vsel %vm119, %v103, %v106
      %v124 = vsel %vm122, %v112, 2102212464
      %v125 = vsel %vm121, %v109, %v124
      %v126 = vsel %vm120, %v123, %v125
      %v127 = vsel %vm119, %v106, %v109
      %v128 = vsel %vm122, %v115, 920167782
      %v129 = vsel %vm121, %v112, %v128
      %v130 = vsel %vm120, %v127, %v129
      %v131 = vsel %vm119, %v109, %v112
      %v132 = vsel %vm122, %v118, 1326507024
      %v133 = vsel %vm121, %v115, %v132
      %v134 = vsel %vm120, %v131, %v133
      %v135 = vshll.u32 %v95, 8
      %v136 = vmul.u32.u64.compose %v135, %v134
      %v137 = vextract.low.u32 %v136
      %v138 = vextract.high.u32 %v136
      %v139 = vmul.u32.u64.compose %v135, %v130
      %v140 = vextract.low.u32 %v139
      %v141 = vextract.high.u32 %v139
      %v142 = vmul.u32 %v135, %v126
      %v143 = vadd.s32 %v138, %v140
      %vm144 = vc.u32 %v138, %v140
      %v145 = vadd.s32 %v141, 1
      %v146 = vsel %vm144, %v145, %v141
      %v147 = vadd.s32 %v142, %v146
      %v148 = vadd.s32 %v147, 536870912
      %v149 = vshrl.u32 %v148, 30
      %v150 = vshll.u32 %v149, 30
      %v151 = vsub.s32 %v147, %v150
      %vm152 = vcmp.lt.s32.totalorder %v151, 0
      %v153 = vsub.s32 0, %v151
      %v154 = vsel %vm152, %v153, %v151
      %v155 = vclz %v154
      %v156 = vsub.s32 %v155, 2
      %vm157 = vcmp.gt.s32.totalorder 0, %v156
      %v158 = vsel %vm157, 0, %v156
      %v159 = vsub.s32 32, %v158
      %v160 = vshll.u32 %v151, %v158
      %v161 = vshrl.u32 %v143, %v159
      %v162 = vor.u32 %v160, %v161
      %v163 = vsub.s32 4294967266, %v158
      %v164 = vadd.s32 %v163, 127
      %v165 = vshll.u32 %v164, 23
      %v166 = vor.u32 4788187, %v165
      %v167 = vand.u32 2147483647, %v166
      %v169 = vcvt.s32.f32 %v162
      %v170 = vmul.f32 %v169, %v167
      %v171 = vxor.u32 %v170, 2147483648
      %v172 = vsel %vm89, %v171, %v170
      %v173 = vsub.s32 4, %v149
      %v174 = vsel %vm89, %v173, %v149
      %v175 = vsel %vm88, %v86, %v172
      %v176 = vsel %vm88, 0, %v174
      %v177 = vcosq.f32.pop %v175
      %v178 = vsinq.f32.pop %v175
      %vm179 = vweird.f32 %v86
      %v180 = vadd.s32 %v176, 3
      %v181 = vand.u32 %v180, 3
      %vm182 = vcmp.lt.s32.totalorder %v181, 2
      %vm183 = vcmp.eq.s32.totalorder %v181, 0
      %v184 = vxor.u32 %v178, 2147483648
      %v185 = vsel %vm183, %v177, %v184
      %vm186 = vcmp.eq.s32.totalorder %v181, 2
      %v187 = vxor.u32 %v177, 2147483648
      %v188 = vsel %vm186, %v187, %v178
      %v189 = vsel %vm182, %v185, %v188
      %v190 = vsel %vm179, nan, %v189
      %v191 = vpack.c.bf16 %v190, %v190
      %v192 = vld [vmem:[#allocation3] sm:$0xf]
      %v193 = vld [vmem:[#allocation3 + $0x4] sm:$0xf]
      %v194 = vld [vmem:[#allocation3 + $0x8] sm:$0xf]
      %v195 = vld [vmem:[#allocation3 + $0xc] sm:$0xf]
      %v196 = vld [vmem:[#allocation3 + $0x10] sm:$0xf]
      %v197 = vld [vmem:[#allocation3 + $0x14] sm:$0xf]
      %v198 = vld [vmem:[#allocation3 + $0x18] sm:$0xf]
      %v199 = vld [vmem:[#allocation3 + $0x1c] sm:$0xf]
      %v200 = vld [vmem:[#allocation3 + $0x20] sm:$0xf]
      %v201 = vld [vmem:[#allocation3 + $0x24] sm:$0xf]
      %v202 = vld [vmem:[#allocation3 + $0x28] sm:$0xf]
      %v203 = vld [vmem:[#allocation3 + $0x2c] sm:$0xf]
      %v204 = vld [vmem:[#allocation3 + $0x30] sm:$0xf]
      %v205 = vld [vmem:[#allocation3 + $0x34] sm:$0xf]
      %v206 = vld [vmem:[#allocation3 + $0x38] sm:$0xf]
      %v207 = vld [vmem:[#allocation3 + $0x3c] sm:$0xf]
      %v208 = vand.u32 2147483647, %v86
      %vm209 = vcmp.le.f32.partialorder %v208, 0.7853982
      %vm210 = vcmp.lt.s32.totalorder %v86, 0
      %v211 = vand.u32 %v86, 2139095040
      %v212 = vshrl.u32 %v211, 23
      %v213 = vsub.s32 %v212, 127
      %v214 = vand.u32 2147483647, %v86
      %v215 = vand.u32 %v214, 8388607
      %v216 = vor.u32 %v215, 8388608
      %v217 = vsub.s32 0, %v216
      %v218 = vadd.s32 %v213, 1
      %vm219 = vcmp.gt.s32.totalorder %v218, 0
      %v220 = vsel %vm219, %v218, 0
      %v221 = vshrl.u32 %v220, 5
      %v222 = vand.u32 %v220, 31
      %v223 = vsub.s32 32, %v222
      %v224 = vshrl.u32 683565275, %v223
      %v225 = vshll.u32 683565275, %v222
      %v226 = vshrl.u32 2475754826, %v223
      %v227 = vor.u32 %v225, %v226
      %v228 = vshll.u32 2475754826, %v222
      %v229 = vshrl.u32 2131351028, %v223
      %v230 = vor.u32 %v228, %v229
      %v231 = vshll.u32 2131351028, %v222
      %v232 = vshrl.u32 2102212464, %v223
      %v233 = vor.u32 %v231, %v232
      %v234 = vshll.u32 2102212464, %v222
      %v235 = vshrl.u32 920167782, %v223
      %v236 = vor.u32 %v234, %v235
      %v237 = vshll.u32 920167782, %v222
      %v238 = vshrl.u32 1326507024, %v223
      %v239 = vor.u32 %v237, %v238
      %vm240 = vcmp.lt.s32.totalorder %v221, 1
      %vm241 = vcmp.lt.s32.totalorder %v221, 2
      %vm242 = vcmp.lt.s32.totalorder %v221, 3
      %vm243 = vcmp.lt.s32.totalorder %v221, 4
      %v244 = vsel %vm240, %v224, %v227
      %v245 = vsel %vm243, %v233, 2102212464
      %v246 = vsel %vm242, %v230, %v245
      %v247 = vsel %vm241, %v244, %v246
      %v248 = vsel %vm240, %v227, %v230
      %v249 = vsel %vm243, %v236, 920167782
      %v250 = vsel %vm242, %v233, %v249
      %v251 = vsel %vm241, %v248, %v250
      %v252 = vsel %vm240, %v230, %v233
      %v253 = vsel %vm243, %v239, 1326507024
      %v254 = vsel %vm242, %v236, %v253
      %v255 = vsel %vm241, %v252, %v254
      %v256 = vshll.u32 %v216, 8
      %v257 = vmul.u32.u64.compose %v256, %v255
      %v258 = vextract.low.u32 %v257
      %v259 = vextract.high.u32 %v257
      %v260 = vmul.u32.u64.compose %v256, %v251
      %v261 = vextract.low.u32 %v260
      %v262 = vextract.high.u32 %v260
      %v263 = vmul.u32 %v256, %v247
      %v264 = vadd.s32 %v259, %v261
      %vm265 = vc.u32 %v259, %v261
      %v266 = vadd.s32 %v262, 1
      %v267 = vsel %vm265, %v266, %v262
      %v268 = vadd.s32 %v263, %v267
      %v269 = vadd.s32 %v268, 536870912
      %v270 = vshrl.u32 %v269, 30
      %v271 = vshll.u32 %v270, 30
      %v272 = vsub.s32 %v268, %v271
      %vm273 = vcmp.lt.s32.totalorder %v272, 0
      %v274 = vsub.s32 0, %v272
      %v275 = vsel %vm273, %v274, %v272
      %v276 = vclz %v275
      %v277 = vsub.s32 %v276, 2
      %vm278 = vcmp.gt.s32.totalorder 0, %v277
      %v279 = vsel %vm278, 0, %v277
      %v280 = vsub.s32 32, %v279
      %v281 = vshll.u32 %v272, %v279
      %v282 = vshrl.u32 %v264, %v280
      %v283 = vor.u32 %v281, %v282
      %v284 = vsub.s32 4294967266, %v279
      %v285 = vadd.s32 %v284, 127
      %v286 = vshll.u32 %v285, 23
      %v287 = vor.u32 4788187, %v286
      %v288 = vand.u32 2147483647, %v287
      %v290 = vcvt.s32.f32 %v283
      %v291 = vmul.f32 %v290, %v288
      %v292 = vxor.u32 %v291, 2147483648
      %v293 = vsel %vm210, %v292, %v291
      %v294 = vsub.s32 4, %v270
      %v295 = vsel %vm210, %v294, %v270
      %v296 = vsel %vm209, %v86, %v293
      %v297 = vsel %vm209, 0, %v295
      %v298 = vcosq.f32.pop %v296
      %v299 = vsinq.f32.pop %v296
      %vm300 = vweird.f32 %v86
      %v301 = vand.u32 %v297, 3
      %vm302 = vcmp.lt.s32.totalorder %v301, 2
      %vm303 = vcmp.eq.s32.totalorder %v301, 0
      %v304 = vxor.u32 %v299, 2147483648
      %v305 = vsel %vm303, %v298, %v304
      %vm306 = vcmp.eq.s32.totalorder %v301, 2
      %v307 = vxor.u32 %v298, 2147483648
      %v308 = vsel %vm306, %v307, %v299
      %v309 = vsel %vm302, %v305, %v308
      %v310 = vsel %vm300, nan, %v309
      %v311 = vpack.c.bf16 %v310, %v310
      %v312 = vld [vmem:[#allocation6] sm:$0xf]
      %v313 = vld [vmem:[#allocation6 + $0x4] sm:$0xf]
      %v314 = vld [vmem:[#allocation6 + $0x8] sm:$0xf]
      %v315 = vld [vmem:[#allocation6 + $0xc] sm:$0xf]
      %v316 = vld [vmem:[#allocation6 + $0x10] sm:$0xf]
      %v317 = vld [vmem:[#allocation6 + $0x14] sm:$0xf]
      %v318 = vld [vmem:[#allocation6 + $0x18] sm:$0xf]
      %v319 = vld [vmem:[#allocation6 + $0x1c] sm:$0xf]
      %v320 = vld [vmem:[#allocation6 + $0x20] sm:$0xf]
      %v321 = vld [vmem:[#allocation6 + $0x24] sm:$0xf]
      %v322 = vld [vmem:[#allocation6 + $0x28] sm:$0xf]
      %v323 = vld [vmem:[#allocation6 + $0x2c] sm:$0xf]
      %v324 = vld [vmem:[#allocation6 + $0x30] sm:$0xf]
      %v325 = vld [vmem:[#allocation6 + $0x34] sm:$0xf]
      %v326 = vld [vmem:[#allocation6 + $0x38] sm:$0xf]
      %v327 = vld [vmem:[#allocation6 + $0x3c] sm:$0xf]
      %v344 = vunpack.c.l.b16 %v312
      %v345 = vunpack.c.l.b16 %v313
      %v346 = vunpack.c.l.b16 %v314
      %v347 = vunpack.c.l.b16 %v315
      %v348 = vunpack.c.l.b16 %v316
      %v349 = vunpack.c.l.b16 %v317
      %v350 = vunpack.c.l.b16 %v318
      %v351 = vunpack.c.l.b16 %v319
      %v352 = vunpack.c.l.b16 %v320
      %v353 = vunpack.c.l.b16 %v321
      %v354 = vunpack.c.l.b16 %v322
      %v355 = vunpack.c.l.b16 %v323
      %v356 = vunpack.c.l.b16 %v324
      %v357 = vunpack.c.l.b16 %v325
      %v358 = vunpack.c.l.b16 %v326
      %v359 = vunpack.c.l.b16 %v327
      %v360 = vpack.c.b16 %v345, %v344
      %v361 = vpack.c.b16 %v347, %v346
      %v362 = vpack.c.b16 %v349, %v348
      %v363 = vpack.c.b16 %v351, %v350
      %v364 = vpack.c.b16 %v353, %v352
      %v365 = vpack.c.b16 %v355, %v354
      %v366 = vpack.c.b16 %v357, %v356
      %v367 = vpack.c.b16 %v359, %v358
      %376 = vmatprep.subr.bf16.mxu0 0
      %377 = vmatpush1.bf16.msra.mxu0 %v360
      %378 = vmatprep.subr.bf16.mxu0 0
      %379 = vmatpush1.bf16.msra.mxu0 %v361
      %380 = vmatprep.subr.bf16.mxu0 0
      %381 = vmatpush1.bf16.msra.mxu0 %v362
      %382 = vmatprep.subr.bf16.mxu0 0
      %383 = vmatpush1.bf16.msra.mxu0 %v363
      %384 = vmatprep.subr.bf16.mxu0 0
      %385 = vmatpush1.bf16.msra.mxu0 %v364
      %386 = vmatprep.subr.bf16.mxu0 0
      %387 = vmatpush1.bf16.msra.mxu0 %v365
      %388 = vmatprep.subr.bf16.mxu0 0
      %389 = vmatpush1.bf16.msra.mxu0 %v366
      %390 = vmatprep.subr.bf16.mxu0 0
      %391 = vmatpush1.bf16.msra.mxu0 %v367
      %392 = vmatprep.subr.bf16.mxu0 0
      %393 = vmatpush1.bf16.msra.mxu0 0
      %394 = vmatprep.subr.bf16.mxu0 0
      %395 = vmatpush1.bf16.msra.mxu0 0
      %396 = vmatprep.subr.bf16.mxu0 0
      %397 = vmatpush1.bf16.msra.mxu0 0
      %398 = vmatprep.subr.bf16.mxu0 0
      %399 = vmatpush1.bf16.msra.mxu0 0
      %400 = vmatprep.subr.bf16.mxu0 0
      %401 = vmatpush1.bf16.msra.mxu0 0
      %402 = vmatprep.subr.bf16.mxu0 0
      %403 = vmatpush1.bf16.msra.mxu0 0
      %404 = vmatprep.subr.bf16.mxu0 0
      %405 = vmatpush1.bf16.msra.mxu0 0
      %406 = vmatprep.subr.bf16.mxu0 0
      %407 = vmatpush1.bf16.msra.mxu0 0
      %408 = vmatprep.mubr.bf16.mxu0 0
      %409 = vmatmul.mubr.bf16.gmra.mrb[0].mxu0 %v311
      %v410 = vpop.f32.mrb[0].mxu0
      %v411 = vadd.f32 0.0, %v410
      %v412 = vpop.f32.mrb[0].mxu0
      %v413 = vpop.f32.mrb[0].mxu0
      %v414 = vpop.f32.mrb[0].mxu0
      %415 = vdwg.mxu0
      %v432 = vunpack.c.l.b16 %v192
      %v433 = vunpack.c.l.b16 %v193
      %v434 = vunpack.c.l.b16 %v194
      %v435 = vunpack.c.l.b16 %v195
      %v436 = vunpack.c.l.b16 %v196
      %v437 = vunpack.c.l.b16 %v197
      %v438 = vunpack.c.l.b16 %v198
      %v439 = vunpack.c.l.b16 %v199
      %v440 = vunpack.c.l.b16 %v200
      %v441 = vunpack.c.l.b16 %v201
      %v442 = vunpack.c.l.b16 %v202
      %v443 = vunpack.c.l.b16 %v203
      %v444 = vunpack.c.l.b16 %v204
      %v445 = vunpack.c.l.b16 %v205
      %v446 = vunpack.c.l.b16 %v206
      %v447 = vunpack.c.l.b16 %v207
      %v448 = vpack.c.b16 %v433, %v432
      %v449 = vpack.c.b16 %v435, %v434
      %v450 = vpack.c.b16 %v437, %v436
      %v451 = vpack.c.b16 %v439, %v438
      %v452 = vpack.c.b16 %v441, %v440
      %v453 = vpack.c.b16 %v443, %v442
      %v454 = vpack.c.b16 %v445, %v444
      %v455 = vpack.c.b16 %v447, %v446
      %464 = vmatprep.subr.bf16.mxu0 0
      %465 = vmatpush1.bf16.msra.mxu0 %v448
      %466 = vmatprep.subr.bf16.mxu0 0
      %467 = vmatpush1.bf16.msra.mxu0 %v449
      %468 = vmatprep.subr.bf16.mxu0 0
      %469 = vmatpush1.bf16.msra.mxu0 %v450
      %470 = vmatprep.subr.bf16.mxu0 0
      %471 = vmatpush1.bf16.msra.mxu0 %v451
      %472 = vmatprep.subr.bf16.mxu0 0
      %473 = vmatpush1.bf16.msra.mxu0 %v452
      %474 = vmatprep.subr.bf16.mxu0 0
      %475 = vmatpush1.bf16.msra.mxu0 %v453
      %476 = vmatprep.subr.bf16.mxu0 0
      %477 = vmatpush1.bf16.msra.mxu0 %v454
      %478 = vmatprep.subr.bf16.mxu0 0
      %479 = vmatpush1.bf16.msra.mxu0 %v455
      %480 = vmatprep.subr.bf16.mxu0 0
      %481 = vmatpush1.bf16.msra.mxu0 0
      %482 = vmatprep.subr.bf16.mxu0 0
      %483 = vmatpush1.bf16.msra.mxu0 0
      %484 = vmatprep.subr.bf16.mxu0 0
      %485 = vmatpush1.bf16.msra.mxu0 0
      %486 = vmatprep.subr.bf16.mxu0 0
      %487 = vmatpush1.bf16.msra.mxu0 0
      %488 = vmatprep.subr.bf16.mxu0 0
      %489 = vmatpush1.bf16.msra.mxu0 0
      %490 = vmatprep.subr.bf16.mxu0 0
      %491 = vmatpush1.bf16.msra.mxu0 0
      %492 = vmatprep.subr.bf16.mxu0 0
      %493 = vmatpush1.bf16.msra.mxu0 0
      %494 = vmatprep.subr.bf16.mxu0 0
      %495 = vmatpush1.bf16.msra.mxu0 0
      %496 = vmatprep.mubr.bf16.mxu0 0
      %497 = vmatmul.mubr.bf16.gmra.mrb[0].mxu0 %v191
      %v498 = vpop.f32.mrb[0].mxu0
      %v499 = vadd.f32 %v411, %v498
      %v500 = vpop.f32.mrb[0].mxu0
      %v501 = vpop.f32.mrb[0].mxu0
      %v502 = vpop.f32.mrb[0].mxu0
      %503 = vdwg.mxu0
      %v504 = vld [vmem:[%s4] sm:$0x1]
      %v506 = vlaneseq
      %v507 = vshrl.u32 %v506, 7
      %v508 = vsub.s32 0, %v507
      %v509 = vrot.slane %v504, %v508
      %v511 = vadd.f32 %v499, %v509
      %v512 = vmul.f32 %v511, 0.5
      %v513 = vtanh.pop %v512
      %v514 = vadd.f32 %v513, 1.0
      %v515 = vmul.f32 %v514, 0.5
      %v516 = vmul.f32 %v511, %v515
      %517 = vst [vmem:[#allocation2] sm:$0xff] %v516
    $region45: #{tpu_custom_call.1} parent=1 // pred_fallthru
      _
    %v518 = vld [vmem:[#allocation2] sm:$0xff]
    %v519 = vpack.c.bf16 %v518, %v518
    %v520 = vld [vmem:[#allocation8] sm:$0xf]
    %v521 = vld [vmem:[#allocation8 + $0x4] sm:$0xf]
    %v522 = vld [vmem:[#allocation8 + $0x8] sm:$0xf]
    %v523 = vld [vmem:[#allocation8 + $0xc] sm:$0xf]
    %v524 = vld [vmem:[#allocation8 + $0x10] sm:$0xf]
    %v525 = vld [vmem:[#allocation8 + $0x14] sm:$0xf]
    %v526 = vld [vmem:[#allocation8 + $0x18] sm:$0xf]
    %v527 = vld [vmem:[#allocation8 + $0x1c] sm:$0xf]
    %v528 = vld [vmem:[#allocation8 + $0x20] sm:$0xf]
    %v529 = vld [vmem:[#allocation8 + $0x24] sm:$0xf]
    %v530 = vld [vmem:[#allocation8 + $0x28] sm:$0xf]
    %v531 = vld [vmem:[#allocation8 + $0x2c] sm:$0xf]
    %v532 = vld [vmem:[#allocation8 + $0x30] sm:$0xf]
    %v533 = vld [vmem:[#allocation8 + $0x34] sm:$0xf]
    %v534 = vld [vmem:[#allocation8 + $0x38] sm:$0xf]
    %v535 = vld [vmem:[#allocation8 + $0x3c] sm:$0xf]
    %v536 = vld [vmem:[%s6] sm:$0x1]
    %v538 = vlaneseq
    %v539 = vshrl.u32 %v538, 7
    %v540 = vsub.s32 0, %v539
    %v541 = vrot.slane %v536, %v540
    %v559 = vunpack.c.l.b16 %v520
    %v560 = vunpack.c.l.b16 %v521
    %v561 = vunpack.c.l.b16 %v522
    %v562 = vunpack.c.l.b16 %v523
    %v563 = vunpack.c.l.b16 %v524
    %v564 = vunpack.c.l.b16 %v525
    %v565 = vunpack.c.l.b16 %v526
    %v566 = vunpack.c.l.b16 %v527
    %v567 = vunpack.c.l.b16 %v528
    %v568 = vunpack.c.l.b16 %v529
    %v569 = vunpack.c.l.b16 %v530
    %v570 = vunpack.c.l.b16 %v531
    %v571 = vunpack.c.l.b16 %v532
    %v572 = vunpack.c.l.b16 %v533
    %v573 = vunpack.c.l.b16 %v534
    %v574 = vunpack.c.l.b16 %v535
    %v575 = vpack.c.b16 %v560, %v559
    %v576 = vpack.c.b16 %v562, %v561
    %v577 = vpack.c.b16 %v564, %v563
    %v578 = vpack.c.b16 %v566, %v565
    %v579 = vpack.c.b16 %v568, %v567
    %v580 = vpack.c.b16 %v570, %v569
    %v581 = vpack.c.b16 %v572, %v571
    %v582 = vpack.c.b16 %v574, %v573
    %591 = vmatprep.subr.bf16.mxu0 0
    %592 = vmatpush1.bf16.msra.mxu0 %v575
    %593 = vmatprep.subr.bf16.mxu0 0
    %594 = vmatpush1.bf16.msra.mxu0 %v576
    %595 = vmatprep.subr.bf16.mxu0 0
    %596 = vmatpush1.bf16.msra.mxu0 %v577
    %597 = vmatprep.subr.bf16.mxu0 0
    %598 = vmatpush1.bf16.msra.mxu0 %v578
    %599 = vmatprep.subr.bf16.mxu0 0
    %600 = vmatpush1.bf16.msra.mxu0 %v579
    %601 = vmatprep.subr.bf16.mxu0 0
    %602 = vmatpush1.bf16.msra.mxu0 %v580
    %603 = vmatprep.subr.bf16.mxu0 0
    %604 = vmatpush1.bf16.msra.mxu0 %v581
    %605 = vmatprep.subr.bf16.mxu0 0
    %606 = vmatpush1.bf16.msra.mxu0 %v582
    %607 = vmatprep.subr.bf16.mxu0 0
    %608 = vmatpush1.bf16.msra.mxu0 0
    %609 = vmatprep.subr.bf16.mxu0 0
    %610 = vmatpush1.bf16.msra.mxu0 0
    %611 = vmatprep.subr.bf16.mxu0 0
    %612 = vmatpush1.bf16.msra.mxu0 0
    %613 = vmatprep.subr.bf16.mxu0 0
    %614 = vmatpush1.bf16.msra.mxu0 0
    %615 = vmatprep.subr.bf16.mxu0 0
    %616 = vmatpush1.bf16.msra.mxu0 0
    %617 = vmatprep.subr.bf16.mxu0 0
    %618 = vmatpush1.bf16.msra.mxu0 0
    %619 = vmatprep.subr.bf16.mxu0 0
    %620 = vmatpush1.bf16.msra.mxu0 0
    %621 = vmatprep.subr.bf16.mxu0 0
    %622 = vmatpush1.bf16.msra.mxu0 0
    %623 = vmatprep.mubr.bf16.mxu0 0
    %624 = vmatmul.mubr.bf16.gmra.mrb[0].mxu0 %v519
    %v625 = vpop.f32.mrb[0].mxu0
    %v626 = vadd.f32 %v541, %v625
    %v627 = vpop.f32.mrb[0].mxu0
    %v628 = vpop.f32.mrb[0].mxu0
    %v629 = vpop.f32.mrb[0].mxu0
    %630 = vdwg.mxu0
    %v631 = vpack.c.bf16 %v626, %v626
    %632 = vst [vmem:[#allocation9] sm:$0xf] %v631
    // Predicated region
    $region46: #{tpu_custom_call.1} parent=1 // pred_check
      _
    $region47: #{tpu_custom_call.1} parent=1 // pred_check_branch
      %634 = sbr.rel (0) target = $region49
    $region48: #{tpu_custom_call.1} parent=1 // pred_region
      %s636 = ssub.s32 64, 64
      %637 = vsyncadd [#allocation5], %s636
      %s639 = sshll.u32 [#allocation9], 4
      %s640 = int_to_ptr.vmem [resolvable:$true] %s639
      %642 = dma.vmem_to_hbm [thread:$0]  %s640, 64, %s7, [#allocation5]
    $region49: #{tpu_custom_call.1} parent=1 // pred_fallthru
      _
    // Predicated region
    $region50: #{tpu_custom_call.1} parent=1 // pred_check
      _
    $region51: #{tpu_custom_call.1} parent=1 // pred_check_branch
      %644 = sbr.rel (0) target = $region53
    $region52: #{tpu_custom_call.1} parent=1 // pred_region
      %645 = dma.done [#allocation5], 64
    $region53: #{tpu_custom_call.1} parent=1 // pred_fallthru
      _
    %646 = vsyncpa [#allocation4], 1
    %647 = vsyncpa [#allocation7], 1
    %648 = vsyncpa [#allocation5], 1

</llo_original>
